<compile_context>
chip_gen: v6e
topology: v6e:2x2x1
jax: 0.10.0
libtpu: 0.0.40
codegen_flags: <defaults>
</compile_context>

<pallas_src>
import functools

import jax
import jax.numpy as jnp
from jax.experimental import pallas as pl
from jax.experimental.pallas import tpu as pltpu


# ------------------------------- kernel ---------------------------------------


def _fused_kernel(x_ref, w_ref, g_ref, b_ref, o_ref,
                  sum_sc, ssq_sc, scale_sc, shift_sc,
                  *, k, l_out, inv_count, eps):
    """Fused Conv1d -> BatchNorm1d(train) -> ReLU over grid (phase, N).

    phase 0: conv tile + per-channel sum / sum-of-squares accumulation.
    phase 1: BN fold (once, at n == 0) + recompute conv tile + affine + ReLU.
    The conv recompute uses the same f32 dot sequence as phase 0, so the
    statistics and the normalized values are bit-consistent.
    """
    phase = pl.program_id(0)
    n = pl.program_id(1)

    # Conv1d (stride 1) as K shifted lane-slices of the padded input row:
    # (C_out, C_in) @ (C_in, L_out) per tap, accumulated in f32 on the MXU.
    y = jnp.dot(w_ref[0], x_ref[:, 0:l_out], preferred_element_type=jnp.float32)
    for kk in range(1, k):
        y = y + jnp.dot(w_ref[kk], x_ref[:, kk:kk + l_out],
                        preferred_element_type=jnp.float32)

    @pl.when((phase == 0) & (n == 0))
    def _init():
        sum_sc[...] = jnp.zeros_like(sum_sc)
        ssq_sc[...] = jnp.zeros_like(ssq_sc)

    @pl.when(phase == 0)
    def _stats():
        sum_sc[...] += jnp.sum(y, axis=1, keepdims=True)
        ssq_sc[...] += jnp.sum(y * y, axis=1, keepdims=True)

    @pl.when((phase == 1) & (n == 0))
    def _fold():
        mean = sum_sc[...] * inv_count
        # E[y^2] - E[y]^2 can go slightly negative in f32; clamp before rsqrt.
        var = jnp.maximum(ssq_sc[...] * inv_count - mean * mean, 0.0)
        inv_std = jax.lax.rsqrt(var + eps)            # EUP op, effectively free
        scale = g_ref[...] * inv_std
        scale_sc[...] = scale
        shift_sc[...] = b_ref[...] - mean * scale

    @pl.when(phase == 1)
    def _apply():
        z = y * scale_sc[...] + shift_sc[...]         # (C_out, L) * (C_out, 1)
        o_ref[...] = jnp.maximum(z, 0.0).astype(o_ref.dtype)


# ------------------------------- wrapper --------------------------------------


def conv1d_block(x, w, gamma, beta, *, padding=1, eps=1e-5):
    """Conv1d(bias=False, stride=1) + BatchNorm1d(train) + ReLU.

    x: (N, C_in, L); w: (C_out, C_in, K); gamma/beta: (C_out,).
    Returns (N, C_out, L_out) with L_out = L + 2*padding - K + 1.
    """
    n, c_in, l = x.shape
    c_out, c_in_w, k = w.shape
    assert c_in_w == c_in
    l_in = l + 2 * padding
    l_out = l_in - k + 1                               # stride fixed to 1

    # Only the conv's own zero padding is materialized (tiny); no im2col.
    xp = jnp.pad(x.astype(jnp.float32), ((0, 0), (0, 0), (padding, padding)))
    wk = jnp.transpose(w.astype(jnp.float32), (2, 0, 1))      # (K, C_out, C_in)
    g = gamma.reshape(c_out, 1).astype(jnp.float32)
    b = beta.reshape(c_out, 1).astype(jnp.float32)

    inv_count = 1.0 / float(n * l_out)                 # BN training-mode count

    kernel = functools.partial(_fused_kernel, k=k, l_out=l_out,
                               inv_count=inv_count, eps=float(eps))

    # Rough VMEM footprint: double-buffered input/output blocks + resident
    # weight/affine blocks. Only raise the scoped limit when actually needed,
    # capped well below v7x's 64 MiB physical VMEM.
    vmem_est = 4 * (2 * c_in * l_in + 2 * c_out * l_out
                    + k * c_out * c_in + 8 * c_out)
    cp_kwargs = dict(dimension_semantics=("arbitrary", "arbitrary"))
    if vmem_est > 12 * 1024 * 1024:
        cp_kwargs["vmem_limit_bytes"] = min(2 * vmem_est, 48 * 1024 * 1024)

    out = pl.pallas_call(
        kernel,
        grid=(2, n),                                   # (phase, batch)
        in_specs=[
            # one padded input row per batch element; full (C_in, L_in) block
            pl.BlockSpec((None, c_in, l_in), lambda p, i: (i, 0, 0)),
            # weights / gamma / beta: constant-index, stay resident in VMEM
            pl.BlockSpec((k, c_out, c_in), lambda p, i: (0, 0, 0)),
            pl.BlockSpec((c_out, 1), lambda p, i: (0, 0)),
            pl.BlockSpec((c_out, 1), lambda p, i: (0, 0)),
        ],
        # Phase 0 parks the (never-written) output buffer on block 0; phase 1
        # walks the real blocks — output lands directly in (N, C_out, L) layout.
        out_specs=pl.BlockSpec((None, c_out, l_out), lambda p, i: (i * p, 0, 0)),
        out_shape=jax.ShapeDtypeStruct((n, c_out, l_out), x.dtype),
        scratch_shapes=[
            pltpu.VMEM((c_out, 1), jnp.float32),       # per-channel sum
            pltpu.VMEM((c_out, 1), jnp.float32),       # per-channel sum of squares
            pltpu.VMEM((c_out, 1), jnp.float32),       # folded BN scale
            pltpu.VMEM((c_out, 1), jnp.float32),       # folded BN shift
        ],
        compiler_params=pltpu.CompilerParams(**cp_kwargs),
    )(xp, wk, g, b)
    return out


# ------------------------------- reference ------------------------------------


def _reference(x, w, gamma, beta, *, padding=1, eps=1e-5):
    """Pure-JAX reference mirroring PyTorch Conv1d + BatchNorm1d(train) + ReLU."""
    y = jax.lax.conv_general_dilated(
        x, w, window_strides=(1,), padding=[(padding, padding)],
        dimension_numbers=("NCH", "OIH", "NCH"))
    mean = jnp.mean(y, axis=(0, 2), keepdims=True)
    var = jnp.mean((y - mean) ** 2, axis=(0, 2), keepdims=True)
    y = (y - mean) / jnp.sqrt(var + eps)
    y = y * gamma.reshape(1, -1, 1) + beta.reshape(1, -1, 1)
    return jnp.maximum(y, 0.0)


if __name__ == "__main__":
    # Small shapes consistent with Conv1dBlock(in_ch=4, out_ch=8, k=3, pad=1).
    N, C_IN, C_OUT, L, K = 2, 4, 8, 16, 3

    key = jax.random.PRNGKey(0)
    kx, kw, kg, kb = jax.random.split(key, 4)

    x = jax.random.normal(kx, (N, C_IN, L), dtype=jnp.float32)
    # Conv weight ~ PyTorch kaiming-uniform bound = 1/sqrt(C_in * K)
    bound = 1.0 / (C_IN * K) ** 0.5
    w = jax.random.uniform(kw, (C_OUT, C_IN, K), jnp.float32, -bound, bound)
    gamma = 1.0 + 0.1 * jax.random.normal(kg, (C_OUT,), jnp.float32)
    beta = 0.1 * jax.random.normal(kb, (C_OUT,), jnp.float32)

    out = conv1d_block(x, w, gamma, beta, padding=1)
    out = jax.block_until_ready(out)

    ref = _reference(x, w, gamma, beta, padding=1)
    assert out.shape == (N, C_OUT, L)
    assert jnp.allclose(out, ref, atol=1e-4, rtol=1e-4), "mismatch vs reference"

    print("KERNEL_OK")
</pallas_src>

<mosaic_0001>
module attributes {stable_mosaic.version = 11 : i64} {
  func.func @_fused_kernel(%arg0: i32, %arg1: i32, %arg2: memref<1x4x18xf32, #tpu.memory_space<vmem>>, %arg3: memref<3x8x4xf32, #tpu.memory_space<vmem>>, %arg4: memref<8x1xf32, #tpu.memory_space<vmem>>, %arg5: memref<8x1xf32, #tpu.memory_space<vmem>>, %arg6: memref<1x8x16xf32, #tpu.memory_space<vmem>>, %arg7: memref<8x1xf32, #tpu.memory_space<vmem>>, %arg8: memref<8x1xf32, #tpu.memory_space<vmem>>, %arg9: memref<8x1xf32, #tpu.memory_space<vmem>>, %arg10: memref<8x1xf32, #tpu.memory_space<vmem>>) attributes {dimension_semantics = [#tpu.dimension_semantics<arbitrary>, #tpu.dimension_semantics<arbitrary>], iteration_bounds = array<i64: 2, 2>, scalar_prefetch = 0 : i64, scratch_operands = 4 : i64, tpu.core_type = #tpu.core_type<tc>, window_params = [{transform_indices = @transform_0, window_bounds = array<i64: 1, 4, 18>}, {pipeline_mode = #tpu.pipeline_mode<synchronous>, transform_indices = @transform_1, window_bounds = array<i64: 3, 8, 4>}, {pipeline_mode = #tpu.pipeline_mode<synchronous>, transform_indices = @transform_2, window_bounds = array<i64: 8, 1>}, {pipeline_mode = #tpu.pipeline_mode<synchronous>, transform_indices = @transform_3, window_bounds = array<i64: 8, 1>}, {transform_indices = @transform_4, window_bounds = array<i64: 1, 8, 16>}]} {
    %c0 = arith.constant 0 : index
    %c0_0 = arith.constant 0 : index
    %c0_1 = arith.constant 0 : index
    %0 = vector.load %arg3[%c0, %c0_0, %c0_1] : memref<3x8x4xf32, #tpu.memory_space<vmem>>, vector<1x8x4xf32>
    %1 = vector.shape_cast %0 : vector<1x8x4xf32> to vector<8x4xf32>
    %c0_2 = arith.constant 0 : index
    %c0_3 = arith.constant 0 : index
    %c0_4 = arith.constant 0 : index
    %2 = vector.load %arg2[%c0_2, %c0_3, %c0_4] : memref<1x4x18xf32, #tpu.memory_space<vmem>>, vector<1x4x16xf32>
    %3 = vector.shape_cast %2 : vector<1x4x16xf32> to vector<4x16xf32>
    %cst = arith.constant dense<0.000000e+00> : vector<8x16xf32>
    %4 = tpu.matmul %1, %3, %cst {dimension_numbers = #tpu.dot_dimension_numbers<[1], [0], [0], [1], [0, 0, 1, 1], [], []>} : vector<8x4xf32>, vector<4x16xf32>, vector<8x16xf32> -> vector<8x16xf32>
    %c1 = arith.constant 1 : index
    %c0_5 = arith.constant 0 : index
    %c0_6 = arith.constant 0 : index
    %5 = vector.load %arg3[%c1, %c0_5, %c0_6] : memref<3x8x4xf32, #tpu.memory_space<vmem>>, vector<1x8x4xf32>
    %6 = vector.shape_cast %5 : vector<1x8x4xf32> to vector<8x4xf32>
    %c0_7 = arith.constant 0 : index
    %c0_8 = arith.constant 0 : index
    %c1_9 = arith.constant 1 : index
    %7 = vector.load %arg2[%c0_7, %c0_8, %c1_9] : memref<1x4x18xf32, #tpu.memory_space<vmem>>, vector<1x4x16xf32>
    %8 = vector.shape_cast %7 : vector<1x4x16xf32> to vector<4x16xf32>
    %cst_10 = arith.constant dense<0.000000e+00> : vector<8x16xf32>
    %9 = tpu.matmul %6, %8, %cst_10 {dimension_numbers = #tpu.dot_dimension_numbers<[1], [0], [0], [1], [0, 0, 1, 1], [], []>} : vector<8x4xf32>, vector<4x16xf32>, vector<8x16xf32> -> vector<8x16xf32>
    %10 = arith.addf %4, %9 : vector<8x16xf32>
    %c2 = arith.constant 2 : index
    %c0_11 = arith.constant 0 : index
    %c0_12 = arith.constant 0 : index
    %11 = vector.load %arg3[%c2, %c0_11, %c0_12] : memref<3x8x4xf32, #tpu.memory_space<vmem>>, vector<1x8x4xf32>
    %12 = vector.shape_cast %11 : vector<1x8x4xf32> to vector<8x4xf32>
    %c0_13 = arith.constant 0 : index
    %c0_14 = arith.constant 0 : index
    %c2_15 = arith.constant 2 : index
    %13 = vector.load %arg2[%c0_13, %c0_14, %c2_15] : memref<1x4x18xf32, #tpu.memory_space<vmem>>, vector<1x4x16xf32>
    %14 = vector.shape_cast %13 : vector<1x4x16xf32> to vector<4x16xf32>
    %cst_16 = arith.constant dense<0.000000e+00> : vector<8x16xf32>
    %15 = tpu.matmul %12, %14, %cst_16 {dimension_numbers = #tpu.dot_dimension_numbers<[1], [0], [0], [1], [0, 0, 1, 1], [], []>} : vector<8x4xf32>, vector<4x16xf32>, vector<8x16xf32> -> vector<8x16xf32>
    %16 = arith.addf %10, %15 : vector<8x16xf32>
    %c0_i32 = arith.constant 0 : i32
    %17 = arith.cmpi eq, %arg0, %c0_i32 : i32
    %c0_i32_17 = arith.constant 0 : i32
    %18 = arith.cmpi eq, %arg1, %c0_i32_17 : i32
    %19 = arith.andi %17, %18 : i1
    %20 = arith.extui %19 : i1 to i32
    %c0_i32_18 = arith.constant 0 : i32
    %21 = arith.cmpi ne, %20, %c0_i32_18 : i32
    scf.if %21 {
      %cst_25 = arith.constant 0.000000e+00 : f32
      %33 = vector.broadcast %cst_25 : f32 to vector<8x1xf32>
      %c0_26 = arith.constant 0 : index
      %c0_27 = arith.constant 0 : index
      %34 = vector.load %arg7[%c0_26, %c0_27] : memref<8x1xf32, #tpu.memory_space<vmem>>, vector<8x1xf32>
      tpu.vector_store %arg7[%c0_26, %c0_27], %33 {strides = array<i32>} : memref<8x1xf32, #tpu.memory_space<vmem>>, vector<8x1xf32>,
      %cst_28 = arith.constant 0.000000e+00 : f32
      %35 = vector.broadcast %cst_28 : f32 to vector<8x1xf32>
      %c0_29 = arith.constant 0 : index
      %c0_30 = arith.constant 0 : index
      %36 = vector.load %arg8[%c0_29, %c0_30] : memref<8x1xf32, #tpu.memory_space<vmem>>, vector<8x1xf32>
      tpu.vector_store %arg8[%c0_29, %c0_30], %35 {strides = array<i32>} : memref<8x1xf32, #tpu.memory_space<vmem>>, vector<8x1xf32>,
    } else {
    }
    %c0_i32_19 = arith.constant 0 : i32
    %22 = arith.cmpi eq, %arg0, %c0_i32_19 : i32
    %23 = arith.extui %22 : i1 to i32
    %c0_i32_20 = arith.constant 0 : i32
    %24 = arith.cmpi ne, %23, %c0_i32_20 : i32
    scf.if %24 {
      %c0_25 = arith.constant 0 : index
      %c0_26 = arith.constant 0 : index
      %33 = vector.load %arg7[%c0_25, %c0_26] : memref<8x1xf32, #tpu.memory_space<vmem>>, vector<8x1xf32>
      %cst_27 = arith.constant dense<0.000000e+00> : vector<8xf32>
      %34 = vector.multi_reduction <add>, %16, %cst_27 [1] : vector<8x16xf32> to vector<8xf32>
      %35 = vector.shape_cast %34 : vector<8xf32> to vector<8x1xf32>
      %36 = arith.addf %33, %35 : vector<8x1xf32>
      %c0_28 = arith.constant 0 : index
      %c0_29 = arith.constant 0 : index
      %37 = vector.load %arg7[%c0_28, %c0_29] : memref<8x1xf32, #tpu.memory_space<vmem>>, vector<8x1xf32>
      tpu.vector_store %arg7[%c0_28, %c0_29], %36 {strides = array<i32>} : memref<8x1xf32, #tpu.memory_space<vmem>>, vector<8x1xf32>,
      %c0_30 = arith.constant 0 : index
      %c0_31 = arith.constant 0 : index
      %38 = vector.load %arg8[%c0_30, %c0_31] : memref<8x1xf32, #tpu.memory_space<vmem>>, vector<8x1xf32>
      %39 = arith.mulf %16, %16 : vector<8x16xf32>
      %cst_32 = arith.constant dense<0.000000e+00> : vector<8xf32>
      %40 = vector.multi_reduction <add>, %39, %cst_32 [1] : vector<8x16xf32> to vector<8xf32>
      %41 = vector.shape_cast %40 : vector<8xf32> to vector<8x1xf32>
      %42 = arith.addf %38, %41 : vector<8x1xf32>
      %c0_33 = arith.constant 0 : index
      %c0_34 = arith.constant 0 : index
      %43 = vector.load %arg8[%c0_33, %c0_34] : memref<8x1xf32, #tpu.memory_space<vmem>>, vector<8x1xf32>
      tpu.vector_store %arg8[%c0_33, %c0_34], %42 {strides = array<i32>} : memref<8x1xf32, #tpu.memory_space<vmem>>, vector<8x1xf32>,
    } else {
    }
    %c1_i32 = arith.constant 1 : i32
    %25 = arith.cmpi eq, %arg0, %c1_i32 : i32
    %c0_i32_21 = arith.constant 0 : i32
    %26 = arith.cmpi eq, %arg1, %c0_i32_21 : i32
    %27 = arith.andi %25, %26 : i1
    %28 = arith.extui %27 : i1 to i32
    %c0_i32_22 = arith.constant 0 : i32
    %29 = arith.cmpi ne, %28, %c0_i32_22 : i32
    scf.if %29 {
      %c0_25 = arith.constant 0 : index
      %c0_26 = arith.constant 0 : index
      %33 = vector.load %arg7[%c0_25, %c0_26] : memref<8x1xf32, #tpu.memory_space<vmem>>, vector<8x1xf32>
      %cst_27 = arith.constant 3.125000e-02 : f32
      %34 = vector.broadcast %cst_27 : f32 to vector<8x1xf32>
      %35 = arith.mulf %33, %34 : vector<8x1xf32>
      %c0_28 = arith.constant 0 : index
      %c0_29 = arith.constant 0 : index
      %36 = vector.load %arg8[%c0_28, %c0_29] : memref<8x1xf32, #tpu.memory_space<vmem>>, vector<8x1xf32>
      %cst_30 = arith.constant 3.125000e-02 : f32
      %37 = vector.broadcast %cst_30 : f32 to vector<8x1xf32>
      %38 = arith.mulf %36, %37 : vector<8x1xf32>
      %39 = arith.mulf %35, %35 : vector<8x1xf32>
      %40 = arith.subf %38, %39 : vector<8x1xf32>
      %cst_31 = arith.constant 0.000000e+00 : f32
      %41 = vector.broadcast %cst_31 : f32 to vector<8x1xf32>
      %42 = arith.maximumf %40, %41 : vector<8x1xf32>
      %cst_32 = arith.constant 9.99999974E-6 : f32
      %43 = vector.broadcast %cst_32 : f32 to vector<8x1xf32>
      %44 = arith.addf %42, %43 : vector<8x1xf32>
      %45 = math.rsqrt %44 : vector<8x1xf32>
      %c0_33 = arith.constant 0 : index
      %c0_34 = arith.constant 0 : index
      %46 = vector.load %arg4[%c0_33, %c0_34] : memref<8x1xf32, #tpu.memory_space<vmem>>, vector<8x1xf32>
      %47 = arith.mulf %46, %45 : vector<8x1xf32>
      %c0_35 = arith.constant 0 : index
      %c0_36 = arith.constant 0 : index
      %48 = vector.load %arg9[%c0_35, %c0_36] : memref<8x1xf32, #tpu.memory_space<vmem>>, vector<8x1xf32>
      tpu.vector_store %arg9[%c0_35, %c0_36], %47 {strides = array<i32>} : memref<8x1xf32, #tpu.memory_space<vmem>>, vector<8x1xf32>,
      %c0_37 = arith.constant 0 : index
      %c0_38 = arith.constant 0 : index
      %49 = vector.load %arg5[%c0_37, %c0_38] : memref<8x1xf32, #tpu.memory_space<vmem>>, vector<8x1xf32>
      %50 = arith.mulf %35, %47 : vector<8x1xf32>
      %51 = arith.subf %49, %50 : vector<8x1xf32>
      %c0_39 = arith.constant 0 : index
      %c0_40 = arith.constant 0 : index
      %52 = vector.load %arg10[%c0_39, %c0_40] : memref<8x1xf32, #tpu.memory_space<vmem>>, vector<8x1xf32>
      tpu.vector_store %arg10[%c0_39, %c0_40], %51 {strides = array<i32>} : memref<8x1xf32, #tpu.memory_space<vmem>>, vector<8x1xf32>,
    } else {
    }
    %c1_i32_23 = arith.constant 1 : i32
    %30 = arith.cmpi eq, %arg0, %c1_i32_23 : i32
    %31 = arith.extui %30 : i1 to i32
    %c0_i32_24 = arith.constant 0 : i32
    %32 = arith.cmpi ne, %31, %c0_i32_24 : i32
    scf.if %32 {
      %c0_25 = arith.constant 0 : index
      %c0_26 = arith.constant 0 : index
      %33 = vector.load %arg9[%c0_25, %c0_26] : memref<8x1xf32, #tpu.memory_space<vmem>>, vector<8x1xf32>
      %34 = vector.broadcast %33 : vector<8x1xf32> to vector<8x16xf32>
      %35 = arith.mulf %16, %34 : vector<8x16xf32>
      %c0_27 = arith.constant 0 : index
      %c0_28 = arith.constant 0 : index
      %36 = vector.load %arg10[%c0_27, %c0_28] : memref<8x1xf32, #tpu.memory_space<vmem>>, vector<8x1xf32>
      %37 = vector.broadcast %36 : vector<8x1xf32> to vector<8x16xf32>
      %38 = arith.addf %35, %37 : vector<8x16xf32>
      %cst_29 = arith.constant 0.000000e+00 : f32
      %39 = vector.broadcast %cst_29 : f32 to vector<8x16xf32>
      %40 = arith.maximumf %38, %39 : vector<8x16xf32>
      %c0_30 = arith.constant 0 : index
      %c0_31 = arith.constant 0 : index
      %c0_32 = arith.constant 0 : index
      %41 = vector.load %arg6[%c0_30, %c0_31, %c0_32] : memref<1x8x16xf32, #tpu.memory_space<vmem>>, vector<1x8x16xf32>
      %42 = vector.shape_cast %41 : vector<1x8x16xf32> to vector<8x16xf32>
      %43 = vector.shape_cast %40 : vector<8x16xf32> to vector<1x8x16xf32>
      tpu.vector_store %arg6[%c0_30, %c0_31, %c0_32], %43 {strides = array<i32>} : memref<1x8x16xf32, #tpu.memory_space<vmem>>, vector<1x8x16xf32>,
    } else {
    }
    return
  }
  func.func @transform_0(%arg0: i32, %arg1: i32) -> (i32, i32, i32) {
    %c0_i32 = arith.constant 0 : i32
    %c0_i32_0 = arith.constant 0 : i32
    %c0_i32_1 = arith.constant 0 : i32
    return %arg1, %c0_i32, %c0_i32_0 : i32, i32, i32
  }
  func.func @transform_1(%arg0: i32, %arg1: i32) -> (i32, i32, i32) {
    %c0_i32 = arith.constant 0 : i32
    %c0_i32_0 = arith.constant 0 : i32
    %c0_i32_1 = arith.constant 0 : i32
    %c0_i32_2 = arith.constant 0 : i32
    return %c0_i32, %c0_i32_0, %c0_i32_1 : i32, i32, i32
  }
  func.func @transform_2(%arg0: i32, %arg1: i32) -> (i32, i32) {
    %c0_i32 = arith.constant 0 : i32
    %c0_i32_0 = arith.constant 0 : i32
    %c0_i32_1 = arith.constant 0 : i32
    return %c0_i32, %c0_i32_0 : i32, i32
  }
  func.func @transform_3(%arg0: i32, %arg1: i32) -> (i32, i32) {
    %c0_i32 = arith.constant 0 : i32
    %c0_i32_0 = arith.constant 0 : i32
    %c0_i32_1 = arith.constant 0 : i32
    return %c0_i32, %c0_i32_0 : i32, i32
  }
  func.func @transform_4(%arg0: i32, %arg1: i32) -> (i32, i32, i32) {
    %0 = arith.muli %arg1, %arg0 : i32
    %c0_i32 = arith.constant 0 : i32
    %c0_i32_0 = arith.constant 0 : i32
    %c0_i32_1 = arith.constant 0 : i32
    return %0, %c0_i32, %c0_i32_0 : i32, i32, i32
  }
}

</mosaic_0001>

<llo_original>
// kernel: tpu_custom_call.1
$region0: #{tpu_custom_call.1}
  #allocation0 [shape = 'u32[]', space=smem, size = 0x4, offset = 0x4, fixed_abs, tag = 'smem constant byte address 0x4 - core index']
  #allocation1 [shape = 'u32[144,128]{1,0:T(1,128)}', space=vmem, size = 0x12000, scoped, tag = 'internal scratch']
  #allocation2 [shape = 'f32[8,1]{1,0:T(8,128)}', space=vmem, size = 0x1000, scoped, tag = 'scratch operand']
  #allocation3 [shape = 'f32[8,1]{1,0:T(8,128)}', space=vmem, size = 0x1000, scoped, tag = 'scratch operand']
  #allocation4 [shape = 'f32[8,1]{1,0:T(8,128)}', space=vmem, size = 0x1000, scoped, tag = 'scratch operand']
  #allocation5 [shape = 'f32[8,1]{1,0:T(8,128)}', space=vmem, size = 0x1000, scoped, tag = 'scratch operand']
  %s0 = inlined_call_operand.vmem [shape: f32[2,4,18], index: 0, kind: input, shape index: {}]
  %s1 = inlined_call_operand.vmem [shape: f32[3,8,4], index: 1, kind: input, shape index: {}]
  %s2 = inlined_call_operand.vmem [shape: f32[8,1], index: 2, kind: input, shape index: {}]
  %s3 = inlined_call_operand.vmem [shape: f32[8,1], index: 3, kind: input, shape index: {}]
  %s4 = inlined_call_operand.hbm [shape: f32[2,8,16], index: 4, kind: output, shape index: {}]
  %s5 = sld [smem:[#allocation0]]
  $region65: #{tpu_custom_call.1} parent=0
    _
  %s7 = ssub.s32 1, %s5
  %s8 = scalar_select 0, %s7, %s5
  $region1: #{tpu_custom_call.1} parent=0
    #allocation6 [shape = 'u8[8192]{0}', space=vmem, size = 0x2000, scoped, tag = 'output window, operand 0']
    #allocation7 [shape = 's32[2]{0}', space=sflag, size = 0x8, scoped, tag = 'scoped memory for tpu_custom_call.1']
    %9 = vsyncpa [#allocation7], 0
    %s10 = scalar_lea.sflag [#allocation7], 1
    %11 = vsyncpa %s10, 0
    loop: start=0, step=1, limit=6
    $region2: #{tpu_custom_call.1} parent=1 // loop_pre_header
      _
    $region3: #{tpu_custom_call.1} parent=1 // loop_header
      %s13 = sphi 0, %s17
      %p14 = scmp.ge.s32.totalorder %s13, 6
      %s20 = sphi 0, %s32
      %s21 = sphi 0, %s28
      %s22 = sphi 0, %s20
      %s23 = sphi 0, %s21
      %s24 = sphi 0, %s22
      %s25 = sphi 0, %s23
      %s35 = sphi 0, %s37
      %s38 = sphi 0, %s35
      %s39 = sphi 0, %s38
      %s55 = sphi 0, %s39
      %s59 = sphi 0, %s59
      %s61 = sphi 0, %s59
      %s62 = sphi 0, %s61
      %s76 = sphi 0, %s62
      %s80 = sphi 0, %s80
      %s82 = sphi 0, %s80
      %s83 = sphi 0, %s82
      %s97 = sphi 0, %s83
      %s101 = sphi 0, %s101
      %s103 = sphi 0, %s101
      %s104 = sphi 0, %s103
      %s118 = sphi 0, %s104
      %s126 = sphi 0, %s128
      %s129 = sphi 0, %s126
      %s130 = sphi 0, %s129
      %s146 = sphi 0, %s130
    $region4: #{tpu_custom_call.1} parent=1 // loop_header_branch
      %16 = sbr.rel (%p14) target = $region8
    $region5: #{tpu_custom_call.1} parent=1 // loop_body
      %s18 = ssub.s32 %s13, 1
      %s19 = ssub.s32 %s13, 2
      %s26 = sadd.s32 1, %s21
      %p27 = scmp.ge.s32.totalorder %s26, 2
      %s28 = scalar_select %p27, 0, %s26
      %s29 = sadd.s32 1, %s20
      %s30 = scalar_select %p27, %s29, %s20
      %p31 = scmp.ge.s32.totalorder %s30, 2
      %s32 = scalar_select %p31, 0, %s30
      %s33 = ssub.s32 %s21, %s28
      %p34 = scmp.eq.s32.totalorder %s33, 0
      %s36 = sadd.s32 %s35, 1
      %s37 = scalar_select %p34, %s35, %s36
      %p40 = pneg %p34
      %p41 = scmp.eq.s32.totalorder %s13, 3
      %p42 = por %p40, %p41
      %p43 = scmp.ne.s32.totalorder %s35, %s38
      %p44 = scmp.eq.s32.totalorder %s13, 0
      %p45 = por %p43, %p44
      %p46 = scmp.ne.s32.totalorder %s35, %s38
      %p47 = scmp.eq.s32.totalorder %s18, 3
      %p48 = por %p46, %p47
      %p49 = scmp.ne.s32.totalorder %s38, %s39
      %p50 = scmp.eq.s32.totalorder %s18, 0
      %p51 = por %p49, %p50
      %p52 = scmp.ne.s32.totalorder %s38, %s39
      %p53 = scmp.eq.s32.totalorder %s19, 3
      %p54 = por %p52, %p53
      %p56 = scmp.ne.s32.totalorder %s39, %s55
      %p57 = scmp.eq.s32.totalorder %s19, 0
      %p58 = por %p56, %p57
      %s60 = sadd.s32 %s59, 1
      %p63 = scmp.eq.s32.totalorder %s13, 3
      %p64 = scmp.ne.s32.totalorder %s59, %s61
      %p65 = scmp.eq.s32.totalorder %s13, 0
      %p66 = por %p64, %p65
      %p67 = scmp.ne.s32.totalorder %s59, %s61
      %p68 = scmp.eq.s32.totalorder %s18, 3
      %p69 = por %p67, %p68
      %p70 = scmp.ne.s32.totalorder %s61, %s62
      %p71 = scmp.eq.s32.totalorder %s18, 0
      %p72 = por %p70, %p71
      %p73 = scmp.ne.s32.totalorder %s61, %s62
      %p74 = scmp.eq.s32.totalorder %s19, 3
      %p75 = por %p73, %p74
      %p77 = scmp.ne.s32.totalorder %s62, %s76
      %p78 = scmp.eq.s32.totalorder %s19, 0
      %p79 = por %p77, %p78
      %s81 = sadd.s32 %s80, 1
      %p84 = scmp.eq.s32.totalorder %s13, 3
      %p85 = scmp.ne.s32.totalorder %s80, %s82
      %p86 = scmp.eq.s32.totalorder %s13, 0
      %p87 = por %p85, %p86
      %p88 = scmp.ne.s32.totalorder %s80, %s82
      %p89 = scmp.eq.s32.totalorder %s18, 3
      %p90 = por %p88, %p89
      %p91 = scmp.ne.s32.totalorder %s82, %s83
      %p92 = scmp.eq.s32.totalorder %s18, 0
      %p93 = por %p91, %p92
      %p94 = scmp.ne.s32.totalorder %s82, %s83
      %p95 = scmp.eq.s32.totalorder %s19, 3
      %p96 = por %p94, %p95
      %p98 = scmp.ne.s32.totalorder %s83, %s97
      %p99 = scmp.eq.s32.totalorder %s19, 0
      %p100 = por %p98, %p99
      %s102 = sadd.s32 %s101, 1
      %p105 = scmp.eq.s32.totalorder %s13, 3
      %p106 = scmp.ne.s32.totalorder %s101, %s103
      %p107 = scmp.eq.s32.totalorder %s13, 0
      %p108 = por %p106, %p107
      %p109 = scmp.ne.s32.totalorder %s101, %s103
      %p110 = scmp.eq.s32.totalorder %s18, 3
      %p111 = por %p109, %p110
      %p112 = scmp.ne.s32.totalorder %s103, %s104
      %p113 = scmp.eq.s32.totalorder %s18, 0
      %p114 = por %p112, %p113
      %p115 = scmp.ne.s32.totalorder %s103, %s104
      %p116 = scmp.eq.s32.totalorder %s19, 3
      %p117 = por %p115, %p116
      %p119 = scmp.ne.s32.totalorder %s104, %s118
      %p120 = scmp.eq.s32.totalorder %s19, 0
      %p121 = por %p119, %p120
      %s122 = smul.u32 %s21, %s20
      %s123 = smul.u32 %s28, %s32
      %s124 = ssub.s32 %s122, %s123
      %p125 = scmp.eq.s32.totalorder %s124, 0
      %s127 = sadd.s32 %s126, 1
      %s128 = scalar_select %p125, %s126, %s127
      %p131 = pneg %p125
      %p132 = scmp.eq.s32.totalorder %s13, 3
      %p133 = por %p131, %p132
      %p134 = scmp.ne.s32.totalorder %s126, %s129
      %p135 = scmp.eq.s32.totalorder %s13, 0
      %p136 = por %p134, %p135
      %p137 = scmp.ne.s32.totalorder %s126, %s129
      %p138 = scmp.eq.s32.totalorder %s18, 3
      %p139 = por %p137, %p138
      %p140 = scmp.ne.s32.totalorder %s129, %s130
      %p141 = scmp.eq.s32.totalorder %s18, 0
      %p142 = por %p140, %p141
      %p143 = scmp.ne.s32.totalorder %s129, %s130
      %p144 = scmp.eq.s32.totalorder %s19, 3
      %p145 = por %p143, %p144
      %p147 = scmp.ne.s32.totalorder %s130, %s146
      %p148 = scmp.eq.s32.totalorder %s19, 0
      %p149 = por %p147, %p148
      %p150 = scmp.le.s32.totalorder 1, %s13
      %p151 = scmp.lt.s32.totalorder %s13, 5
      %p152 = pnand %p150, %p151
      %p153 = pneg %p152
      // Predicated region
      $region9: #{tpu_custom_call.1} parent=5 // pred_check
        _
      $region10: #{tpu_custom_call.1} parent=5 // pred_check_branch
        %155 = sbr.rel (%p152) target = $region12
      $region11: #{tpu_custom_call.1} parent=5 // pred_region
        %s156 = ssub.s32 %s13, 1
        // Predicated region
        $region13: #{tpu_custom_call.1} parent=11 // pred_check
          %p157 = pneg %p72
        $region14: #{tpu_custom_call.1} parent=11 // pred_check_branch
          %159 = sbr.rel (%p157) target = $region16
        $region15: #{tpu_custom_call.1} parent=11 // pred_region
          _
        $region16: #{tpu_custom_call.1} parent=11 // pred_fallthru
          _
        // Predicated region
        $region17: #{tpu_custom_call.1} parent=11 // pred_check
          %p160 = pneg %p93
        $region18: #{tpu_custom_call.1} parent=11 // pred_check_branch
          %162 = sbr.rel (%p160) target = $region20
        $region19: #{tpu_custom_call.1} parent=11 // pred_region
          _
        $region20: #{tpu_custom_call.1} parent=11 // pred_fallthru
          _
        // Predicated region
        $region21: #{tpu_custom_call.1} parent=11 // pred_check
          %p163 = pneg %p114
        $region22: #{tpu_custom_call.1} parent=11 // pred_check_branch
          %165 = sbr.rel (%p163) target = $region24
        $region23: #{tpu_custom_call.1} parent=11 // pred_region
          _
        $region24: #{tpu_custom_call.1} parent=11 // pred_fallthru
          _
      $region12: #{tpu_custom_call.1} parent=5 // pred_fallthru
        _
      %p166 = scmp.lt.s32.totalorder %s13, 4
      // Predicated region
      $region25: #{tpu_custom_call.1} parent=5 // pred_check
        %p167 = pneg %p166
      $region26: #{tpu_custom_call.1} parent=5 // pred_check_branch
        %169 = sbr.rel (%p167) target = $region28
      $region27: #{tpu_custom_call.1} parent=5 // pred_region
        // Predicated region
        $region29: #{tpu_custom_call.1} parent=27 // pred_check
          %p170 = pneg %p45
        $region30: #{tpu_custom_call.1} parent=27 // pred_check_branch
          %172 = sbr.rel (%p170) target = $region32
        $region31: #{tpu_custom_call.1} parent=27 // pred_region
          %p173 = scmp.lt.s32.totalorder %s21, 1
          %s174 = scalar_select %p173, %s21, 1
          %s175 = smul.addr %s174, 4
          %s176 = scalar_lea.vmem %s0, %s175
        $region32: #{tpu_custom_call.1} parent=27 // pred_fallthru
          _
      $region28: #{tpu_custom_call.1} parent=5 // pred_fallthru
        _
      %p177 = scmp.le.s32.totalorder 1, %s13
      %p178 = scmp.lt.s32.totalorder %s13, 5
      %p179 = pnand %p177, %p178
      %p180 = pneg %p179
      // Predicated region
      $region33: #{tpu_custom_call.1} parent=5 // pred_check
        _
      $region34: #{tpu_custom_call.1} parent=5 // pred_check_branch
        %182 = sbr.rel (%p179) target = $region36
      $region35: #{tpu_custom_call.1} parent=5 // pred_region
        %s183 = ssub.s32 %s13, 1
        %p184 = scmp.lt.s32.totalorder %s23, 1
        %s185 = scalar_select %p184, %s23, 1
        %s186 = smul.addr %s185, 4
        %s187 = scalar_lea.vmem %s0, %s186
        %p188 = pneg %p51
        %p189 = pneg %p48
        %p190 = pneg %p72
        %p191 = pneg %p69
        %p192 = pneg %p93
        %p193 = pneg %p90
        %p194 = pneg %p114
        %p195 = pneg %p111
        %p196 = pneg %p142
        %p197 = pneg %p139
        %s198 = sand.u32 %s129, 1
        %s199 = scalar_lea.sflag [#allocation7], %s198
        %s200 = sand.u32 %s129, 1
        %s201 = smul.addr %s200, 8
        %s202 = scalar_lea.vmem [#allocation6], %s201
        %p203 = scmp.lt.s32.totalorder %s23, 1
        %s204 = scalar_select %p203, %s23, 1
        %s205 = smul.addr %s204, 4
        %s206 = scalar_lea.vmem %s0, %s205
        %s207 = smul.u32 %s23, %s22
        %v208 = vld [vmem:[%s1] sm:$0xff]
        %v209 = vld [vmem:[%s206] sm:$0xf]
        %s210 = scalar_lea.vmem %s1, 8
        %v211 = vld [vmem:[%s210] sm:$0xff]
        %213 = vrot.lane.b32.xlu0 %v209, 127
        %v214 = vpop.permute.xlu0 %213
        %vm215 = vcmask 31744
        %v217 = vsel %vm215, %v211, 0
        %vm219 = vcmask 1043456
        %v220 = vsel %vm219, %v214, 0
        %222 = vmatprep.subr.mxu0 0.0
        %223 = vmatpush1.msra.mxu0 0.0
        %224 = vmatprep.subr.mxu0 0.0
        %225 = vmatpush1.msra.mxu0 0.0
        %226 = vmatprep.subr.mxu0 0.0
        %227 = vmatpush1.msra.mxu0 0.0
        %228 = vmatprep.subr.mxu0 0.0
        %229 = vmatpush1.msra.mxu0 0.0
        %230 = vmatprep.subr.mxu0 0.0
        %231 = vmatpush1.msra.mxu0 0.0
        %232 = vmatprep.subr.mxu0 0.0
        %233 = vmatpush1.msra.mxu0 0.0
        %234 = vmatprep.subr.mxu0 0.0
        %235 = vmatpush1.msra.mxu0 0.0
        %236 = vmatprep.subr.mxu0 0.0
        %237 = vmatpush1.msra.mxu0 0.0
        %238 = vmatprep.subr.mxu0 0.0
        %239 = vmatpush1.msra.mxu0 0.0
        %240 = vmatprep.subr.mxu0 0.0
        %241 = vmatpush1.msra.mxu0 0.0
        %242 = vmatprep.subr.mxu0 0.0
        %243 = vmatpush1.msra.mxu0 0.0
        %244 = vmatprep.subr.mxu0 0.0
        %245 = vmatpush1.msra.mxu0 0.0
        %246 = vmatprep.subr.mxu0 0.0
        %247 = vmatpush1.msra.mxu0 0.0
        %248 = vmatprep.subr.mxu0 0.0
        %249 = vmatpush1.msra.mxu0 0.0
        %250 = vmatprep.subr.mxu0 0.0
        %251 = vmatpush1.msra.mxu0 0.0
        %252 = vmatprep.subr.mxu0 0.0
        %253 = vmatpush1.msra.mxu0 %v220
        %254 = vmatprep.subr.mxu0 0.0
        %255 = vmatpush2.msra.mxu0 0.0
        %256 = vmatprep.subr.mxu0 0.0
        %257 = vmatpush2.msra.mxu0 0.0
        %258 = vmatprep.subr.mxu0 0.0
        %259 = vmatpush2.msra.mxu0 0.0
        %260 = vmatprep.subr.mxu0 0.0
        %261 = vmatpush2.msra.mxu0 0.0
        %262 = vmatprep.subr.mxu0 0.0
        %263 = vmatpush2.msra.mxu0 0.0
        %264 = vmatprep.subr.mxu0 0.0
        %265 = vmatpush2.msra.mxu0 0.0
        %266 = vmatprep.subr.mxu0 0.0
        %267 = vmatpush2.msra.mxu0 0.0
        %268 = vmatprep.subr.mxu0 0.0
        %269 = vmatpush2.msra.mxu0 0.0
        %270 = vmatprep.subr.mxu0 0.0
        %271 = vmatpush2.msra.mxu0 0.0
        %272 = vmatprep.subr.mxu0 0.0
        %273 = vmatpush2.msra.mxu0 0.0
        %274 = vmatprep.subr.mxu0 0.0
        %275 = vmatpush2.msra.mxu0 0.0
        %276 = vmatprep.subr.mxu0 0.0
        %277 = vmatpush2.msra.mxu0 0.0
        %278 = vmatprep.subr.mxu0 0.0
        %279 = vmatpush2.msra.mxu0 0.0
        %280 = vmatprep.subr.mxu0 0.0
        %281 = vmatpush2.msra.mxu0 0.0
        %282 = vmatprep.subr.mxu0 0.0
        %283 = vmatpush2.msra.mxu0 0.0
        %284 = vmatprep.subr.mxu0 0.0
        %285 = vmatpush2.msra.mxu0 0.0
        %286 = vmatprep.mubr.f32.mxu0 0.0
        %287 = vmatmul.mubr.f32.gmra.mxu0 %v217
        %v288 = vpop.f32.mrf.mxu0
        %v289 = vadd.f32 0.0, %v288
        %v290 = vpop.f32.mrf.mxu0
        %291 = vdwg.mxu0
        %v293 = vsel %vm215, %v208, 0
        %v295 = vsel %vm219, %v209, 0
        %297 = vmatprep.subr.mxu0 0.0
        %298 = vmatpush1.msra.mxu0 0.0
        %299 = vmatprep.subr.mxu0 0.0
        %300 = vmatpush1.msra.mxu0 0.0
        %301 = vmatprep.subr.mxu0 0.0
        %302 = vmatpush1.msra.mxu0 0.0
        %303 = vmatprep.subr.mxu0 0.0
        %304 = vmatpush1.msra.mxu0 0.0
        %305 = vmatprep.subr.mxu0 0.0
        %306 = vmatpush1.msra.mxu0 0.0
        %307 = vmatprep.subr.mxu0 0.0
        %308 = vmatpush1.msra.mxu0 0.0
        %309 = vmatprep.subr.mxu0 0.0
        %310 = vmatpush1.msra.mxu0 0.0
        %311 = vmatprep.subr.mxu0 0.0
        %312 = vmatpush1.msra.mxu0 0.0
        %313 = vmatprep.subr.mxu0 0.0
        %314 = vmatpush1.msra.mxu0 0.0
        %315 = vmatprep.subr.mxu0 0.0
        %316 = vmatpush1.msra.mxu0 0.0
        %317 = vmatprep.subr.mxu0 0.0
        %318 = vmatpush1.msra.mxu0 0.0
        %319 = vmatprep.subr.mxu0 0.0
        %320 = vmatpush1.msra.mxu0 0.0
        %321 = vmatprep.subr.mxu0 0.0
        %322 = vmatpush1.msra.mxu0 0.0
        %323 = vmatprep.subr.mxu0 0.0
        %324 = vmatpush1.msra.mxu0 0.0
        %325 = vmatprep.subr.mxu0 0.0
        %326 = vmatpush1.msra.mxu0 0.0
        %327 = vmatprep.subr.mxu0 0.0
        %328 = vmatpush1.msra.mxu0 %v295
        %329 = vmatprep.subr.mxu0 0.0
        %330 = vmatpush2.msra.mxu0 0.0
        %331 = vmatprep.subr.mxu0 0.0
        %332 = vmatpush2.msra.mxu0 0.0
        %333 = vmatprep.subr.mxu0 0.0
        %334 = vmatpush2.msra.mxu0 0.0
        %335 = vmatprep.subr.mxu0 0.0
        %336 = vmatpush2.msra.mxu0 0.0
        %337 = vmatprep.subr.mxu0 0.0
        %338 = vmatpush2.msra.mxu0 0.0
        %339 = vmatprep.subr.mxu0 0.0
        %340 = vmatpush2.msra.mxu0 0.0
        %341 = vmatprep.subr.mxu0 0.0
        %342 = vmatpush2.msra.mxu0 0.0
        %343 = vmatprep.subr.mxu0 0.0
        %344 = vmatpush2.msra.mxu0 0.0
        %345 = vmatprep.subr.mxu0 0.0
        %346 = vmatpush2.msra.mxu0 0.0
        %347 = vmatprep.subr.mxu0 0.0
        %348 = vmatpush2.msra.mxu0 0.0
        %349 = vmatprep.subr.mxu0 0.0
        %350 = vmatpush2.msra.mxu0 0.0
        %351 = vmatprep.subr.mxu0 0.0
        %352 = vmatpush2.msra.mxu0 0.0
        %353 = vmatprep.subr.mxu0 0.0
        %354 = vmatpush2.msra.mxu0 0.0
        %355 = vmatprep.subr.mxu0 0.0
        %356 = vmatpush2.msra.mxu0 0.0
        %357 = vmatprep.subr.mxu0 0.0
        %358 = vmatpush2.msra.mxu0 0.0
        %359 = vmatprep.subr.mxu0 0.0
        %360 = vmatpush2.msra.mxu0 0.0
        %361 = vmatprep.mubr.f32.mxu0 0.0
        %362 = vmatmul.mubr.f32.gmra.mxu0 %v293
        %v363 = vpop.f32.mrf.mxu0
        %v364 = vadd.f32 %v289, %v363
        %v365 = vpop.f32.mrf.mxu0
        %366 = vdwg.mxu0
        %s367 = scalar_lea.vmem %s1, 16
        %v368 = vld [vmem:[%s367] sm:$0xff]
        %369 = vrot.lane.b32.xlu0 %v209, 126
        %v370 = vpop.permute.xlu0 %369
        %v372 = vsel %vm215, %v368, 0
        %v374 = vsel %vm219, %v370, 0
        %376 = vmatprep.subr.mxu0 0.0
        %377 = vmatpush1.msra.mxu0 0.0
        %378 = vmatprep.subr.mxu0 0.0
        %379 = vmatpush1.msra.mxu0 0.0
        %380 = vmatprep.subr.mxu0 0.0
        %381 = vmatpush1.msra.mxu0 0.0
        %382 = vmatprep.subr.mxu0 0.0
        %383 = vmatpush1.msra.mxu0 0.0
        %384 = vmatprep.subr.mxu0 0.0
        %385 = vmatpush1.msra.mxu0 0.0
        %386 = vmatprep.subr.mxu0 0.0
        %387 = vmatpush1.msra.mxu0 0.0
        %388 = vmatprep.subr.mxu0 0.0
        %389 = vmatpush1.msra.mxu0 0.0
        %390 = vmatprep.subr.mxu0 0.0
        %391 = vmatpush1.msra.mxu0 0.0
        %392 = vmatprep.subr.mxu0 0.0
        %393 = vmatpush1.msra.mxu0 0.0
        %394 = vmatprep.subr.mxu0 0.0
        %395 = vmatpush1.msra.mxu0 0.0
        %396 = vmatprep.subr.mxu0 0.0
        %397 = vmatpush1.msra.mxu0 0.0
        %398 = vmatprep.subr.mxu0 0.0
        %399 = vmatpush1.msra.mxu0 0.0
        %400 = vmatprep.subr.mxu0 0.0
        %401 = vmatpush1.msra.mxu0 0.0
        %402 = vmatprep.subr.mxu0 0.0
        %403 = vmatpush1.msra.mxu0 0.0
        %404 = vmatprep.subr.mxu0 0.0
        %405 = vmatpush1.msra.mxu0 0.0
        %406 = vmatprep.subr.mxu0 0.0
        %407 = vmatpush1.msra.mxu0 %v374
        %408 = vmatprep.subr.mxu0 0.0
        %409 = vmatpush2.msra.mxu0 0.0
        %410 = vmatprep.subr.mxu0 0.0
        %411 = vmatpush2.msra.mxu0 0.0
        %412 = vmatprep.subr.mxu0 0.0
        %413 = vmatpush2.msra.mxu0 0.0
        %414 = vmatprep.subr.mxu0 0.0
        %415 = vmatpush2.msra.mxu0 0.0
        %416 = vmatprep.subr.mxu0 0.0
        %417 = vmatpush2.msra.mxu0 0.0
        %418 = vmatprep.subr.mxu0 0.0
        %419 = vmatpush2.msra.mxu0 0.0
        %420 = vmatprep.subr.mxu0 0.0
        %421 = vmatpush2.msra.mxu0 0.0
        %422 = vmatprep.subr.mxu0 0.0
        %423 = vmatpush2.msra.mxu0 0.0
        %424 = vmatprep.subr.mxu0 0.0
        %425 = vmatpush2.msra.mxu0 0.0
        %426 = vmatprep.subr.mxu0 0.0
        %427 = vmatpush2.msra.mxu0 0.0
        %428 = vmatprep.subr.mxu0 0.0
        %429 = vmatpush2.msra.mxu0 0.0
        %430 = vmatprep.subr.mxu0 0.0
        %431 = vmatpush2.msra.mxu0 0.0
        %432 = vmatprep.subr.mxu0 0.0
        %433 = vmatpush2.msra.mxu0 0.0
        %434 = vmatprep.subr.mxu0 0.0
        %435 = vmatpush2.msra.mxu0 0.0
        %436 = vmatprep.subr.mxu0 0.0
        %437 = vmatpush2.msra.mxu0 0.0
        %438 = vmatprep.subr.mxu0 0.0
        %439 = vmatpush2.msra.mxu0 0.0
        %440 = vmatprep.mubr.f32.mxu0 0.0
        %441 = vmatmul.mubr.f32.gmra.mxu0 %v372
        %v442 = vpop.f32.mrf.mxu0
        %v443 = vadd.f32 0.0, %v442
        %v444 = vpop.f32.mrf.mxu0
        %445 = vdwg.mxu0
        %v446 = vadd.f32 %v364, %v443
        %p447 = scmp.eq.s32.totalorder %s22, 0
        %p448 = scmp.eq.s32.totalorder %s23, 0
        %p449 = pnand %p447, %p448
        %p450 = pneg %p449
        // Predicated region
        $region37: #{tpu_custom_call.1} parent=35 // pred_check
          _
        $region38: #{tpu_custom_call.1} parent=35 // pred_check_branch
          %452 = sbr.rel (%p449) target = $region40
        $region39: #{tpu_custom_call.1} parent=35 // pred_region
          %vm453 = vcmask 7168
          %454 = vst.msk [vmem:[#allocation2] sm:$0xff] %vm453, 0.0
          %455 = vst.msk [vmem:[#allocation3] sm:$0xff] %vm453, 0.0
        $region40: #{tpu_custom_call.1} parent=35 // pred_fallthru
          _
        // Predicated region
        $region41: #{tpu_custom_call.1} parent=35 // pred_check
          %p456 = pneg %p447
        $region42: #{tpu_custom_call.1} parent=35 // pred_check_branch
          %458 = sbr.rel (%p456) target = $region44
        $region43: #{tpu_custom_call.1} parent=35 // pred_region
          %v459 = vld [vmem:[#allocation2] sm:$0xff]
          %vm460 = vcmask 130048
          %v461 = vsel %vm460, %v446, 0.0
          %462 = vadd.xlane.f32.xlu0 %v461
          %v463 = vpop.xlane.xlu0 %462
          %v464 = vadd.f32 %v459, %v463
          %vm465 = vcmask 7168
          %466 = vst.msk [vmem:[#allocation2] sm:$0xff] %vm465, %v464
          %v467 = vld [vmem:[#allocation3] sm:$0xff]
          %v468 = vmul.f32 %v446, %v446
          %v469 = vsel %vm460, %v468, 0.0
          %470 = vadd.xlane.f32.xlu0 %v469
          %v471 = vpop.xlane.xlu0 %470
          %v472 = vadd.f32 %v467, %v471
          %473 = vst.msk [vmem:[#allocation3] sm:$0xff] %vm465, %v472
        $region44: #{tpu_custom_call.1} parent=35 // pred_fallthru
          _
        %p474 = scmp.eq.s32.totalorder %s22, 1
        %p475 = pnand %p474, %p448
        %p476 = pneg %p475
        // Predicated region
        $region45: #{tpu_custom_call.1} parent=35 // pred_check
          _
        $region46: #{tpu_custom_call.1} parent=35 // pred_check_branch
          %478 = sbr.rel (%p475) target = $region48
        $region47: #{tpu_custom_call.1} parent=35 // pred_region
          %v479 = vld [vmem:[#allocation2] sm:$0xff]
          %v480 = vmul.f32 %v479, 0.03125
          %v481 = vld [vmem:[#allocation3] sm:$0xff]
          %v482 = vmul.f32 %v481, 0.03125
          %v483 = vmul.f32 %v480, %v480
          %v484 = vsub.f32 %v482, %v483
          %v485 = vmax.f32 %v484, 0.0
          %v486 = vadd.f32 %v485, 1e-05
          %v487 = vrsqrt.pop %v486
          %v488 = vld [vmem:[%s2] sm:$0xff]
          %v489 = vmul.f32 %v488, %v487
          %vm490 = vcmask 7168
          %491 = vst.msk [vmem:[#allocation4] sm:$0xff] %vm490, %v489
          %v492 = vld [vmem:[%s3] sm:$0xff]
          %v493 = vmul.f32 %v480, %v489
          %v494 = vsub.f32 %v492, %v493
          %495 = vst.msk [vmem:[#allocation5] sm:$0xff] %vm490, %v494
        $region48: #{tpu_custom_call.1} parent=35 // pred_fallthru
          _
        // Predicated region
        $region49: #{tpu_custom_call.1} parent=35 // pred_check
          %p496 = pneg %p474
        $region50: #{tpu_custom_call.1} parent=35 // pred_check_branch
          %498 = sbr.rel (%p496) target = $region52
        $region51: #{tpu_custom_call.1} parent=35 // pred_region
          %v499 = vld [vmem:[#allocation4] sm:$0xff]
          %501 = vset.pattern.permute.xlu0 0
          %502 = vperm.xlu0 %501, %v499
          %v503 = vpop.permute.xlu0 %502
          %v505 = vmul.f32 %v446, %v503
          %v506 = vld [vmem:[#allocation5] sm:$0xff]
          %508 = vset.pattern.permute.xlu0 0
          %509 = vperm.xlu0 %508, %v506
          %v510 = vpop.permute.xlu0 %509
          %v512 = vadd.f32 %v505, %v510
          %v513 = vmax.f32 %v512, 0.0
          %vm514 = vcmask 130048
          %515 = vst.msk [vmem:[%s202] sm:$0xff] %vm514, %v513
        $region52: #{tpu_custom_call.1} parent=35 // pred_fallthru
          _
        %s516 = sand.u32 %s129, 1
        %s517 = scalar_lea.sflag [#allocation7], %s516
        %s518 = sand.u32 %s129, 1
        %s519 = smul.addr %s518, 8
        %s520 = scalar_lea.vmem [#allocation6], %s519
        // Predicated region
        $region53: #{tpu_custom_call.1} parent=35 // pred_check
          %p521 = pneg %p139
        $region54: #{tpu_custom_call.1} parent=35 // pred_check_branch
          %523 = sbr.rel (%p521) target = $region56
        $region55: #{tpu_custom_call.1} parent=35 // pred_region
          %s524 = smul.u32 %s23, %s22
          %s526 = ssub.s32 128, 128
          %527 = vsyncadd %s517, %s526
          %s528 = smul.addr %s524, 128
          %s529 = scalar_lea.hbm %s4, %s528
          %s531 = sshll.u32 %s520, 4
          %s532 = int_to_ptr.vmem [resolvable:$true] %s531
          %534 = dma.vmem_to_hbm [thread:$0]  %s532, 128, %s529, %s517
        $region56: #{tpu_custom_call.1} parent=35 // pred_fallthru
          _
      $region36: #{tpu_custom_call.1} parent=5 // pred_fallthru
        _
      %p535 = scmp.le.s32.totalorder 2, %s13
      // Predicated region
      $region57: #{tpu_custom_call.1} parent=5 // pred_check
        %p536 = pneg %p535
      $region58: #{tpu_custom_call.1} parent=5 // pred_check_branch
        %538 = sbr.rel (%p536) target = $region60
      $region59: #{tpu_custom_call.1} parent=5 // pred_region
        %s539 = ssub.s32 %s13, 2
        // Predicated region
        $region61: #{tpu_custom_call.1} parent=59 // pred_check
          %p540 = pneg %p145
        $region62: #{tpu_custom_call.1} parent=59 // pred_check_branch
          %542 = sbr.rel (%p540) target = $region64
        $region63: #{tpu_custom_call.1} parent=59 // pred_region
          %s543 = sand.u32 %s130, 1
          %s544 = scalar_lea.sflag [#allocation7], %s543
          %s545 = sand.u32 %s130, 1
          %s546 = smul.addr %s545, 8
          %s547 = scalar_lea.vmem [#allocation6], %s546
          %548 = dma.done %s544, 128
        $region64: #{tpu_custom_call.1} parent=59 // pred_fallthru
          _
      $region60: #{tpu_custom_call.1} parent=5 // pred_fallthru
        _
    $region6: #{tpu_custom_call.1} parent=1 // loop_footer
      %s17 = sadd.s32 1, %s13
    $region7: #{tpu_custom_call.1} parent=1 // loop_footer_branch
      %12 = sbr.rel target = $region3
    $region8: #{tpu_custom_call.1} parent=1 // loop_exit
      _
    %549 = vsyncpa [#allocation7], 1
    %s550 = scalar_lea.sflag [#allocation7], 1
    %551 = vsyncpa %s550, 1

</llo_original>
